<compile_context>
chip_gen: v7x
topology: tpu7x:2x2x1
jax: 0.10.0
libtpu: 0.0.40
codegen_flags: <defaults>
</compile_context>

<pallas_src>
import functools
import math

import jax
import jax.numpy as jnp
from jax.experimental import pallas as pl
from jax.experimental.pallas import tpu as pltpu


def _round_up(x, m):
    return ((x + m - 1) // m) * m


def _time_embedding_kernel(t_sref, table_hbm, w1_ref, b1_ref, w2_ref, b2_ref,
                           out_ref, x_vmem, sems, *, bt):
    """One grid step = one batch tile of `bt` timesteps."""
    base = pl.program_id(0) * bt

    # Issue one async row-gather DMA per timestep in this tile (row index comes
    # from the scalar-prefetched SMEM t array -> data-dependent HBM gather).
    for r in range(bt):  # bt is a small compile-time constant -> static unroll
        row = t_sref[base + r]
        pltpu.make_async_copy(table_hbm.at[row], x_vmem.at[r], sems.at[r]).start()
    # Wait for all gathers before the batched matmul.
    for r in range(bt):
        pltpu.make_async_copy(table_hbm.at[0], x_vmem.at[r], sems.at[r]).wait()

    x = x_vmem[...]                                                   # (bt, dm_pad)
    h = jnp.dot(x, w1_ref[...], preferred_element_type=jnp.float32) + b1_ref[...]
    h = h * jax.nn.sigmoid(h)                                         # Swish
    out = jnp.dot(h, w2_ref[...], preferred_element_type=jnp.float32) + b2_ref[...]
    out_ref[...] = out.astype(out_ref.dtype)


def time_embedding(t, table, w1, b1, w2, b2, *, batch_tile=128):
    """TimeEmbedding forward. t: (B,) int, returns (B, dim) float32."""
    B = t.shape[0]
    T, d_model = table.shape
    dim = w2.shape[1]
    assert w1.shape == (d_model, dim) and w2.shape == (dim, dim)

    # Lane-dense padding of every feature axis.
    dm_pad = _round_up(d_model, 128)
    h_pad = _round_up(dim, 128)
    n_pad = _round_up(dim, 128)

    # Batch tile: multiple of 8 sublanes, capped at `batch_tile` rows per step.
    bt = min(_round_up(B, 8), batch_tile)
    b_pad = _round_up(B, bt)

    f32 = jnp.float32
    table_p = jnp.pad(table.astype(f32), ((0, 0), (0, dm_pad - d_model)))
    w1p = jnp.pad(w1.astype(f32), ((0, dm_pad - d_model), (0, h_pad - dim)))
    b1p = jnp.pad(b1.astype(f32), (0, h_pad - dim)).reshape(1, h_pad)
    w2p = jnp.pad(w2.astype(f32), ((0, h_pad - dim), (0, n_pad - dim)))
    b2p = jnp.pad(b2.astype(f32), (0, n_pad - dim)).reshape(1, n_pad)

    # Clamp so a bad timestep cannot become an OOB DMA source; pad to tile grid.
    t_idx = jnp.clip(t.astype(jnp.int32), 0, T - 1)
    t_idx = jnp.pad(t_idx, (0, b_pad - B))

    kernel = functools.partial(_time_embedding_kernel, bt=bt)

    out = pl.pallas_call(
        kernel,
        out_shape=jax.ShapeDtypeStruct((b_pad, n_pad), jnp.float32),
        grid_spec=pltpu.PrefetchScalarGridSpec(
            num_scalar_prefetch=1,
            grid=(b_pad // bt,),
            in_specs=[
                # Sin/cos table stays in HBM; kernel gathers rows manually.
                pl.BlockSpec(memory_space=pl.ANY),
                # Weights / biases: constant block index -> loaded once, resident.
                pl.BlockSpec((dm_pad, h_pad), lambda i, t_ref: (0, 0)),
                pl.BlockSpec((1, h_pad), lambda i, t_ref: (0, 0)),
                pl.BlockSpec((h_pad, n_pad), lambda i, t_ref: (0, 0)),
                pl.BlockSpec((1, n_pad), lambda i, t_ref: (0, 0)),
            ],
            out_specs=pl.BlockSpec((bt, n_pad), lambda i, t_ref: (i, 0)),
            scratch_shapes=[
                pltpu.VMEM((bt, dm_pad), jnp.float32),      # gathered rows
                pltpu.SemaphoreType.DMA((bt,)),             # one sem per row DMA
            ],
        ),
        compiler_params=pltpu.CompilerParams(
            dimension_semantics=("parallel",)),
    )(t_idx, table_p, w1p, b1p, w2p, b2p)

    return out[:B, :dim]


def make_sinusoidal_table(T, d_model):
    assert d_model % 2 == 0
    freqs = jnp.exp(-(jnp.arange(0, d_model, 2, dtype=jnp.float32) / d_model)
                    * math.log(10000.0))                       # (d_model/2,)
    pos = jnp.arange(T, dtype=jnp.float32)                     # (T,)
    ang = pos[:, None] * freqs[None, :]                        # (T, d_model/2)
    table = jnp.stack([jnp.sin(ang), jnp.cos(ang)], axis=-1)   # (T, d_model/2, 2)
    return table.reshape(T, d_model)                           # interleaved sin/cos


def xavier_uniform(key, fan_in, fan_out):
    a = math.sqrt(6.0 / (fan_in + fan_out))
    # stored as (fan_in, fan_out) == torch_weight.T so kernel computes x @ W
    return jax.random.uniform(key, (fan_in, fan_out), jnp.float32, minval=-a, maxval=a)


def time_embedding_ref(t, table, w1, b1, w2, b2):
    emb = table[t]
    h = emb @ w1 + b1
    h = h * jax.nn.sigmoid(h)
    return h @ w2 + b2


if __name__ == "__main__":
    T, d_model, dim = 16, 32, 64
    B = 8

    key = jax.random.PRNGKey(0)
    k_t, k_w1, k_w2 = jax.random.split(key, 3)

    table = make_sinusoidal_table(T, d_model)
    w1 = xavier_uniform(k_w1, d_model, dim)   # Linear(d_model, dim).weight.T
    b1 = jnp.zeros((dim,), jnp.float32)       # biases init to zero
    w2 = xavier_uniform(k_w2, dim, dim)       # Linear(dim, dim).weight.T
    b2 = jnp.zeros((dim,), jnp.float32)

    t = jax.random.randint(k_t, (B,), 0, T, dtype=jnp.int32)

    out = time_embedding(t, table, w1, b1, w2, b2)
    out = jax.block_until_ready(out)

    ref = time_embedding_ref(t, table, w1, b1, w2, b2)
    assert out.shape == (B, dim)
    assert jnp.allclose(out, ref, atol=1e-4, rtol=1e-4), "mismatch vs reference"

    print("KERNEL_OK")
</pallas_src>

<mosaic_0001>
module attributes {stable_mosaic.version = 11 : i64} {
  func.func @_time_embedding_kernel(%arg0: i32, %arg1: memref<8xi32, #tpu.memory_space<smem>>, %arg2: memref<16x128xf32, #tpu.memory_space<any>>, %arg3: memref<128x128xf32, #tpu.memory_space<vmem>>, %arg4: memref<1x128xf32, #tpu.memory_space<vmem>>, %arg5: memref<128x128xf32, #tpu.memory_space<vmem>>, %arg6: memref<1x128xf32, #tpu.memory_space<vmem>>, %arg7: memref<8x128xf32, #tpu.memory_space<vmem>>, %arg8: memref<8x128xf32, #tpu.memory_space<vmem>>, %arg9: memref<8x!tpu.dma_semaphore, #tpu.memory_space<semaphore_mem>>) attributes {dimension_semantics = [#tpu.dimension_semantics<parallel>], iteration_bounds = array<i64: 1>, scalar_prefetch = 1 : i64, scratch_operands = 2 : i64, tpu.core_type = #tpu.core_type<tc>, window_params = [{}, {pipeline_mode = #tpu.pipeline_mode<synchronous>, transform_indices = @transform_1, window_bounds = array<i64: 128, 128>}, {pipeline_mode = #tpu.pipeline_mode<synchronous>, transform_indices = @transform_2, window_bounds = array<i64: 1, 128>}, {pipeline_mode = #tpu.pipeline_mode<synchronous>, transform_indices = @transform_3, window_bounds = array<i64: 128, 128>}, {pipeline_mode = #tpu.pipeline_mode<synchronous>, transform_indices = @transform_4, window_bounds = array<i64: 1, 128>}, {transform_indices = @transform_5, window_bounds = array<i64: 8, 128>}]} {
    %c8_i32 = arith.constant 8 : i32
    %0 = arith.muli %arg0, %c8_i32 : i32
    %c0_i32 = arith.constant 0 : i32
    %1 = arith.addi %0, %c0_i32 : i32
    %2 = arith.index_cast %1 : i32 to index
    %3 = memref.load %arg1[%2] : memref<8xi32, #tpu.memory_space<smem>>
    %c0_i32_0 = arith.constant 0 : i32
    %c0_i32_1 = arith.constant 0 : i32
    %c0_i32_2 = arith.constant 0 : i32
    %4 = tpu.memref_slice %arg2[%3, %c0_i32_2] : memref<16x128xf32, #tpu.memory_space<any>> -> memref<1x128xf32, #tpu.memory_space<any>>
    %5 = tpu.memref_squeeze %4 : memref<1x128xf32, #tpu.memory_space<any>> -> memref<128xf32, #tpu.memory_space<any>>
    %c0_i32_3 = arith.constant 0 : i32
    %6 = tpu.memref_slice %arg8[%c0_i32_0, %c0_i32_3] : memref<8x128xf32, #tpu.memory_space<vmem>> -> memref<1x128xf32, #tpu.memory_space<vmem>>
    %7 = tpu.memref_squeeze %6 : memref<1x128xf32, #tpu.memory_space<vmem>> -> memref<128xf32, #tpu.memory_space<vmem>>
    %8 = tpu.memref_slice %arg9[%c0_i32_1] : memref<8x!tpu.dma_semaphore, #tpu.memory_space<semaphore_mem>> -> memref<1x!tpu.dma_semaphore, #tpu.memory_space<semaphore_mem>>
    %9 = tpu.memref_squeeze %8 : memref<1x!tpu.dma_semaphore, #tpu.memory_space<semaphore_mem>> -> memref<!tpu.dma_semaphore, #tpu.memory_space<semaphore_mem>>
    tpu.enqueue_dma source(%5 : memref<128xf32, #tpu.memory_space<any>>) target(%7 : memref<128xf32, #tpu.memory_space<vmem>>) target_semaphore(%9 : memref<!tpu.dma_semaphore, #tpu.memory_space<semaphore_mem>>)
    %c1_i32 = arith.constant 1 : i32
    %10 = arith.addi %0, %c1_i32 : i32
    %11 = arith.index_cast %10 : i32 to index
    %12 = memref.load %arg1[%11] : memref<8xi32, #tpu.memory_space<smem>>
    %c1_i32_4 = arith.constant 1 : i32
    %c1_i32_5 = arith.constant 1 : i32
    %c0_i32_6 = arith.constant 0 : i32
    %13 = tpu.memref_slice %arg2[%12, %c0_i32_6] : memref<16x128xf32, #tpu.memory_space<any>> -> memref<1x128xf32, #tpu.memory_space<any>>
    %14 = tpu.memref_squeeze %13 : memref<1x128xf32, #tpu.memory_space<any>> -> memref<128xf32, #tpu.memory_space<any>>
    %c0_i32_7 = arith.constant 0 : i32
    %15 = tpu.memref_slice %arg8[%c1_i32_4, %c0_i32_7] : memref<8x128xf32, #tpu.memory_space<vmem>> -> memref<1x128xf32, #tpu.memory_space<vmem>>
    %16 = tpu.memref_squeeze %15 : memref<1x128xf32, #tpu.memory_space<vmem>> -> memref<128xf32, #tpu.memory_space<vmem>>
    %17 = tpu.memref_slice %arg9[%c1_i32_5] : memref<8x!tpu.dma_semaphore, #tpu.memory_space<semaphore_mem>> -> memref<1x!tpu.dma_semaphore, #tpu.memory_space<semaphore_mem>>
    %18 = tpu.memref_squeeze %17 : memref<1x!tpu.dma_semaphore, #tpu.memory_space<semaphore_mem>> -> memref<!tpu.dma_semaphore, #tpu.memory_space<semaphore_mem>>
    tpu.enqueue_dma source(%14 : memref<128xf32, #tpu.memory_space<any>>) target(%16 : memref<128xf32, #tpu.memory_space<vmem>>) target_semaphore(%18 : memref<!tpu.dma_semaphore, #tpu.memory_space<semaphore_mem>>)
    %c2_i32 = arith.constant 2 : i32
    %19 = arith.addi %0, %c2_i32 : i32
    %20 = arith.index_cast %19 : i32 to index
    %21 = memref.load %arg1[%20] : memref<8xi32, #tpu.memory_space<smem>>
    %c2_i32_8 = arith.constant 2 : i32
    %c2_i32_9 = arith.constant 2 : i32
    %c0_i32_10 = arith.constant 0 : i32
    %22 = tpu.memref_slice %arg2[%21, %c0_i32_10] : memref<16x128xf32, #tpu.memory_space<any>> -> memref<1x128xf32, #tpu.memory_space<any>>
    %23 = tpu.memref_squeeze %22 : memref<1x128xf32, #tpu.memory_space<any>> -> memref<128xf32, #tpu.memory_space<any>>
    %c0_i32_11 = arith.constant 0 : i32
    %24 = tpu.memref_slice %arg8[%c2_i32_8, %c0_i32_11] : memref<8x128xf32, #tpu.memory_space<vmem>> -> memref<1x128xf32, #tpu.memory_space<vmem>>
    %25 = tpu.memref_squeeze %24 : memref<1x128xf32, #tpu.memory_space<vmem>> -> memref<128xf32, #tpu.memory_space<vmem>>
    %26 = tpu.memref_slice %arg9[%c2_i32_9] : memref<8x!tpu.dma_semaphore, #tpu.memory_space<semaphore_mem>> -> memref<1x!tpu.dma_semaphore, #tpu.memory_space<semaphore_mem>>
    %27 = tpu.memref_squeeze %26 : memref<1x!tpu.dma_semaphore, #tpu.memory_space<semaphore_mem>> -> memref<!tpu.dma_semaphore, #tpu.memory_space<semaphore_mem>>
    tpu.enqueue_dma source(%23 : memref<128xf32, #tpu.memory_space<any>>) target(%25 : memref<128xf32, #tpu.memory_space<vmem>>) target_semaphore(%27 : memref<!tpu.dma_semaphore, #tpu.memory_space<semaphore_mem>>)
    %c3_i32 = arith.constant 3 : i32
    %28 = arith.addi %0, %c3_i32 : i32
    %29 = arith.index_cast %28 : i32 to index
    %30 = memref.load %arg1[%29] : memref<8xi32, #tpu.memory_space<smem>>
    %c3_i32_12 = arith.constant 3 : i32
    %c3_i32_13 = arith.constant 3 : i32
    %c0_i32_14 = arith.constant 0 : i32
    %31 = tpu.memref_slice %arg2[%30, %c0_i32_14] : memref<16x128xf32, #tpu.memory_space<any>> -> memref<1x128xf32, #tpu.memory_space<any>>
    %32 = tpu.memref_squeeze %31 : memref<1x128xf32, #tpu.memory_space<any>> -> memref<128xf32, #tpu.memory_space<any>>
    %c0_i32_15 = arith.constant 0 : i32
    %33 = tpu.memref_slice %arg8[%c3_i32_12, %c0_i32_15] : memref<8x128xf32, #tpu.memory_space<vmem>> -> memref<1x128xf32, #tpu.memory_space<vmem>>
    %34 = tpu.memref_squeeze %33 : memref<1x128xf32, #tpu.memory_space<vmem>> -> memref<128xf32, #tpu.memory_space<vmem>>
    %35 = tpu.memref_slice %arg9[%c3_i32_13] : memref<8x!tpu.dma_semaphore, #tpu.memory_space<semaphore_mem>> -> memref<1x!tpu.dma_semaphore, #tpu.memory_space<semaphore_mem>>
    %36 = tpu.memref_squeeze %35 : memref<1x!tpu.dma_semaphore, #tpu.memory_space<semaphore_mem>> -> memref<!tpu.dma_semaphore, #tpu.memory_space<semaphore_mem>>
    tpu.enqueue_dma source(%32 : memref<128xf32, #tpu.memory_space<any>>) target(%34 : memref<128xf32, #tpu.memory_space<vmem>>) target_semaphore(%36 : memref<!tpu.dma_semaphore, #tpu.memory_space<semaphore_mem>>)
    %c4_i32 = arith.constant 4 : i32
    %37 = arith.addi %0, %c4_i32 : i32
    %38 = arith.index_cast %37 : i32 to index
    %39 = memref.load %arg1[%38] : memref<8xi32, #tpu.memory_space<smem>>
    %c4_i32_16 = arith.constant 4 : i32
    %c4_i32_17 = arith.constant 4 : i32
    %c0_i32_18 = arith.constant 0 : i32
    %40 = tpu.memref_slice %arg2[%39, %c0_i32_18] : memref<16x128xf32, #tpu.memory_space<any>> -> memref<1x128xf32, #tpu.memory_space<any>>
    %41 = tpu.memref_squeeze %40 : memref<1x128xf32, #tpu.memory_space<any>> -> memref<128xf32, #tpu.memory_space<any>>
    %c0_i32_19 = arith.constant 0 : i32
    %42 = tpu.memref_slice %arg8[%c4_i32_16, %c0_i32_19] : memref<8x128xf32, #tpu.memory_space<vmem>> -> memref<1x128xf32, #tpu.memory_space<vmem>>
    %43 = tpu.memref_squeeze %42 : memref<1x128xf32, #tpu.memory_space<vmem>> -> memref<128xf32, #tpu.memory_space<vmem>>
    %44 = tpu.memref_slice %arg9[%c4_i32_17] : memref<8x!tpu.dma_semaphore, #tpu.memory_space<semaphore_mem>> -> memref<1x!tpu.dma_semaphore, #tpu.memory_space<semaphore_mem>>
    %45 = tpu.memref_squeeze %44 : memref<1x!tpu.dma_semaphore, #tpu.memory_space<semaphore_mem>> -> memref<!tpu.dma_semaphore, #tpu.memory_space<semaphore_mem>>
    tpu.enqueue_dma source(%41 : memref<128xf32, #tpu.memory_space<any>>) target(%43 : memref<128xf32, #tpu.memory_space<vmem>>) target_semaphore(%45 : memref<!tpu.dma_semaphore, #tpu.memory_space<semaphore_mem>>)
    %c5_i32 = arith.constant 5 : i32
    %46 = arith.addi %0, %c5_i32 : i32
    %47 = arith.index_cast %46 : i32 to index
    %48 = memref.load %arg1[%47] : memref<8xi32, #tpu.memory_space<smem>>
    %c5_i32_20 = arith.constant 5 : i32
    %c5_i32_21 = arith.constant 5 : i32
    %c0_i32_22 = arith.constant 0 : i32
    %49 = tpu.memref_slice %arg2[%48, %c0_i32_22] : memref<16x128xf32, #tpu.memory_space<any>> -> memref<1x128xf32, #tpu.memory_space<any>>
    %50 = tpu.memref_squeeze %49 : memref<1x128xf32, #tpu.memory_space<any>> -> memref<128xf32, #tpu.memory_space<any>>
    %c0_i32_23 = arith.constant 0 : i32
    %51 = tpu.memref_slice %arg8[%c5_i32_20, %c0_i32_23] : memref<8x128xf32, #tpu.memory_space<vmem>> -> memref<1x128xf32, #tpu.memory_space<vmem>>
    %52 = tpu.memref_squeeze %51 : memref<1x128xf32, #tpu.memory_space<vmem>> -> memref<128xf32, #tpu.memory_space<vmem>>
    %53 = tpu.memref_slice %arg9[%c5_i32_21] : memref<8x!tpu.dma_semaphore, #tpu.memory_space<semaphore_mem>> -> memref<1x!tpu.dma_semaphore, #tpu.memory_space<semaphore_mem>>
    %54 = tpu.memref_squeeze %53 : memref<1x!tpu.dma_semaphore, #tpu.memory_space<semaphore_mem>> -> memref<!tpu.dma_semaphore, #tpu.memory_space<semaphore_mem>>
    tpu.enqueue_dma source(%50 : memref<128xf32, #tpu.memory_space<any>>) target(%52 : memref<128xf32, #tpu.memory_space<vmem>>) target_semaphore(%54 : memref<!tpu.dma_semaphore, #tpu.memory_space<semaphore_mem>>)
    %c6_i32 = arith.constant 6 : i32
    %55 = arith.addi %0, %c6_i32 : i32
    %56 = arith.index_cast %55 : i32 to index
    %57 = memref.load %arg1[%56] : memref<8xi32, #tpu.memory_space<smem>>
    %c6_i32_24 = arith.constant 6 : i32
    %c6_i32_25 = arith.constant 6 : i32
    %c0_i32_26 = arith.constant 0 : i32
    %58 = tpu.memref_slice %arg2[%57, %c0_i32_26] : memref<16x128xf32, #tpu.memory_space<any>> -> memref<1x128xf32, #tpu.memory_space<any>>
    %59 = tpu.memref_squeeze %58 : memref<1x128xf32, #tpu.memory_space<any>> -> memref<128xf32, #tpu.memory_space<any>>
    %c0_i32_27 = arith.constant 0 : i32
    %60 = tpu.memref_slice %arg8[%c6_i32_24, %c0_i32_27] : memref<8x128xf32, #tpu.memory_space<vmem>> -> memref<1x128xf32, #tpu.memory_space<vmem>>
    %61 = tpu.memref_squeeze %60 : memref<1x128xf32, #tpu.memory_space<vmem>> -> memref<128xf32, #tpu.memory_space<vmem>>
    %62 = tpu.memref_slice %arg9[%c6_i32_25] : memref<8x!tpu.dma_semaphore, #tpu.memory_space<semaphore_mem>> -> memref<1x!tpu.dma_semaphore, #tpu.memory_space<semaphore_mem>>
    %63 = tpu.memref_squeeze %62 : memref<1x!tpu.dma_semaphore, #tpu.memory_space<semaphore_mem>> -> memref<!tpu.dma_semaphore, #tpu.memory_space<semaphore_mem>>
    tpu.enqueue_dma source(%59 : memref<128xf32, #tpu.memory_space<any>>) target(%61 : memref<128xf32, #tpu.memory_space<vmem>>) target_semaphore(%63 : memref<!tpu.dma_semaphore, #tpu.memory_space<semaphore_mem>>)
    %c7_i32 = arith.constant 7 : i32
    %64 = arith.addi %0, %c7_i32 : i32
    %65 = arith.index_cast %64 : i32 to index
    %66 = memref.load %arg1[%65] : memref<8xi32, #tpu.memory_space<smem>>
    %c7_i32_28 = arith.constant 7 : i32
    %c7_i32_29 = arith.constant 7 : i32
    %c0_i32_30 = arith.constant 0 : i32
    %67 = tpu.memref_slice %arg2[%66, %c0_i32_30] : memref<16x128xf32, #tpu.memory_space<any>> -> memref<1x128xf32, #tpu.memory_space<any>>
    %68 = tpu.memref_squeeze %67 : memref<1x128xf32, #tpu.memory_space<any>> -> memref<128xf32, #tpu.memory_space<any>>
    %c0_i32_31 = arith.constant 0 : i32
    %69 = tpu.memref_slice %arg8[%c7_i32_28, %c0_i32_31] : memref<8x128xf32, #tpu.memory_space<vmem>> -> memref<1x128xf32, #tpu.memory_space<vmem>>
    %70 = tpu.memref_squeeze %69 : memref<1x128xf32, #tpu.memory_space<vmem>> -> memref<128xf32, #tpu.memory_space<vmem>>
    %71 = tpu.memref_slice %arg9[%c7_i32_29] : memref<8x!tpu.dma_semaphore, #tpu.memory_space<semaphore_mem>> -> memref<1x!tpu.dma_semaphore, #tpu.memory_space<semaphore_mem>>
    %72 = tpu.memref_squeeze %71 : memref<1x!tpu.dma_semaphore, #tpu.memory_space<semaphore_mem>> -> memref<!tpu.dma_semaphore, #tpu.memory_space<semaphore_mem>>
    tpu.enqueue_dma source(%68 : memref<128xf32, #tpu.memory_space<any>>) target(%70 : memref<128xf32, #tpu.memory_space<vmem>>) target_semaphore(%72 : memref<!tpu.dma_semaphore, #tpu.memory_space<semaphore_mem>>)
    %c0_i32_32 = arith.constant 0 : i32
    %c0_i32_33 = arith.constant 0 : i32
    %c0_i32_34 = arith.constant 0 : i32
    %c0_i32_35 = arith.constant 0 : i32
    %73 = tpu.memref_slice %arg2[%c0_i32_32, %c0_i32_35] : memref<16x128xf32, #tpu.memory_space<any>> -> memref<1x128xf32, #tpu.memory_space<any>>
    %74 = tpu.memref_squeeze %73 : memref<1x128xf32, #tpu.memory_space<any>> -> memref<128xf32, #tpu.memory_space<any>>
    %c0_i32_36 = arith.constant 0 : i32
    %75 = tpu.memref_slice %arg8[%c0_i32_33, %c0_i32_36] : memref<8x128xf32, #tpu.memory_space<vmem>> -> memref<1x128xf32, #tpu.memory_space<vmem>>
    %76 = tpu.memref_squeeze %75 : memref<1x128xf32, #tpu.memory_space<vmem>> -> memref<128xf32, #tpu.memory_space<vmem>>
    %77 = tpu.memref_slice %arg9[%c0_i32_34] : memref<8x!tpu.dma_semaphore, #tpu.memory_space<semaphore_mem>> -> memref<1x!tpu.dma_semaphore, #tpu.memory_space<semaphore_mem>>
    %78 = tpu.memref_squeeze %77 : memref<1x!tpu.dma_semaphore, #tpu.memory_space<semaphore_mem>> -> memref<!tpu.dma_semaphore, #tpu.memory_space<semaphore_mem>>
    tpu.wait_dma2 semaphore(%78 : memref<!tpu.dma_semaphore, #tpu.memory_space<semaphore_mem>>) src(%74 : memref<128xf32, #tpu.memory_space<any>>) dst(%76 : memref<128xf32, #tpu.memory_space<vmem>>)
    %c0_i32_37 = arith.constant 0 : i32
    %c1_i32_38 = arith.constant 1 : i32
    %c1_i32_39 = arith.constant 1 : i32
    %c0_i32_40 = arith.constant 0 : i32
    %79 = tpu.memref_slice %arg2[%c0_i32_37, %c0_i32_40] : memref<16x128xf32, #tpu.memory_space<any>> -> memref<1x128xf32, #tpu.memory_space<any>>
    %80 = tpu.memref_squeeze %79 : memref<1x128xf32, #tpu.memory_space<any>> -> memref<128xf32, #tpu.memory_space<any>>
    %c0_i32_41 = arith.constant 0 : i32
    %81 = tpu.memref_slice %arg8[%c1_i32_38, %c0_i32_41] : memref<8x128xf32, #tpu.memory_space<vmem>> -> memref<1x128xf32, #tpu.memory_space<vmem>>
    %82 = tpu.memref_squeeze %81 : memref<1x128xf32, #tpu.memory_space<vmem>> -> memref<128xf32, #tpu.memory_space<vmem>>
    %83 = tpu.memref_slice %arg9[%c1_i32_39] : memref<8x!tpu.dma_semaphore, #tpu.memory_space<semaphore_mem>> -> memref<1x!tpu.dma_semaphore, #tpu.memory_space<semaphore_mem>>
    %84 = tpu.memref_squeeze %83 : memref<1x!tpu.dma_semaphore, #tpu.memory_space<semaphore_mem>> -> memref<!tpu.dma_semaphore, #tpu.memory_space<semaphore_mem>>
    tpu.wait_dma2 semaphore(%84 : memref<!tpu.dma_semaphore, #tpu.memory_space<semaphore_mem>>) src(%80 : memref<128xf32, #tpu.memory_space<any>>) dst(%82 : memref<128xf32, #tpu.memory_space<vmem>>)
    %c0_i32_42 = arith.constant 0 : i32
    %c2_i32_43 = arith.constant 2 : i32
    %c2_i32_44 = arith.constant 2 : i32
    %c0_i32_45 = arith.constant 0 : i32
    %85 = tpu.memref_slice %arg2[%c0_i32_42, %c0_i32_45] : memref<16x128xf32, #tpu.memory_space<any>> -> memref<1x128xf32, #tpu.memory_space<any>>
    %86 = tpu.memref_squeeze %85 : memref<1x128xf32, #tpu.memory_space<any>> -> memref<128xf32, #tpu.memory_space<any>>
    %c0_i32_46 = arith.constant 0 : i32
    %87 = tpu.memref_slice %arg8[%c2_i32_43, %c0_i32_46] : memref<8x128xf32, #tpu.memory_space<vmem>> -> memref<1x128xf32, #tpu.memory_space<vmem>>
    %88 = tpu.memref_squeeze %87 : memref<1x128xf32, #tpu.memory_space<vmem>> -> memref<128xf32, #tpu.memory_space<vmem>>
    %89 = tpu.memref_slice %arg9[%c2_i32_44] : memref<8x!tpu.dma_semaphore, #tpu.memory_space<semaphore_mem>> -> memref<1x!tpu.dma_semaphore, #tpu.memory_space<semaphore_mem>>
    %90 = tpu.memref_squeeze %89 : memref<1x!tpu.dma_semaphore, #tpu.memory_space<semaphore_mem>> -> memref<!tpu.dma_semaphore, #tpu.memory_space<semaphore_mem>>
    tpu.wait_dma2 semaphore(%90 : memref<!tpu.dma_semaphore, #tpu.memory_space<semaphore_mem>>) src(%86 : memref<128xf32, #tpu.memory_space<any>>) dst(%88 : memref<128xf32, #tpu.memory_space<vmem>>)
    %c0_i32_47 = arith.constant 0 : i32
    %c3_i32_48 = arith.constant 3 : i32
    %c3_i32_49 = arith.constant 3 : i32
    %c0_i32_50 = arith.constant 0 : i32
    %91 = tpu.memref_slice %arg2[%c0_i32_47, %c0_i32_50] : memref<16x128xf32, #tpu.memory_space<any>> -> memref<1x128xf32, #tpu.memory_space<any>>
    %92 = tpu.memref_squeeze %91 : memref<1x128xf32, #tpu.memory_space<any>> -> memref<128xf32, #tpu.memory_space<any>>
    %c0_i32_51 = arith.constant 0 : i32
    %93 = tpu.memref_slice %arg8[%c3_i32_48, %c0_i32_51] : memref<8x128xf32, #tpu.memory_space<vmem>> -> memref<1x128xf32, #tpu.memory_space<vmem>>
    %94 = tpu.memref_squeeze %93 : memref<1x128xf32, #tpu.memory_space<vmem>> -> memref<128xf32, #tpu.memory_space<vmem>>
    %95 = tpu.memref_slice %arg9[%c3_i32_49] : memref<8x!tpu.dma_semaphore, #tpu.memory_space<semaphore_mem>> -> memref<1x!tpu.dma_semaphore, #tpu.memory_space<semaphore_mem>>
    %96 = tpu.memref_squeeze %95 : memref<1x!tpu.dma_semaphore, #tpu.memory_space<semaphore_mem>> -> memref<!tpu.dma_semaphore, #tpu.memory_space<semaphore_mem>>
    tpu.wait_dma2 semaphore(%96 : memref<!tpu.dma_semaphore, #tpu.memory_space<semaphore_mem>>) src(%92 : memref<128xf32, #tpu.memory_space<any>>) dst(%94 : memref<128xf32, #tpu.memory_space<vmem>>)
    %c0_i32_52 = arith.constant 0 : i32
    %c4_i32_53 = arith.constant 4 : i32
    %c4_i32_54 = arith.constant 4 : i32
    %c0_i32_55 = arith.constant 0 : i32
    %97 = tpu.memref_slice %arg2[%c0_i32_52, %c0_i32_55] : memref<16x128xf32, #tpu.memory_space<any>> -> memref<1x128xf32, #tpu.memory_space<any>>
    %98 = tpu.memref_squeeze %97 : memref<1x128xf32, #tpu.memory_space<any>> -> memref<128xf32, #tpu.memory_space<any>>
    %c0_i32_56 = arith.constant 0 : i32
    %99 = tpu.memref_slice %arg8[%c4_i32_53, %c0_i32_56] : memref<8x128xf32, #tpu.memory_space<vmem>> -> memref<1x128xf32, #tpu.memory_space<vmem>>
    %100 = tpu.memref_squeeze %99 : memref<1x128xf32, #tpu.memory_space<vmem>> -> memref<128xf32, #tpu.memory_space<vmem>>
    %101 = tpu.memref_slice %arg9[%c4_i32_54] : memref<8x!tpu.dma_semaphore, #tpu.memory_space<semaphore_mem>> -> memref<1x!tpu.dma_semaphore, #tpu.memory_space<semaphore_mem>>
    %102 = tpu.memref_squeeze %101 : memref<1x!tpu.dma_semaphore, #tpu.memory_space<semaphore_mem>> -> memref<!tpu.dma_semaphore, #tpu.memory_space<semaphore_mem>>
    tpu.wait_dma2 semaphore(%102 : memref<!tpu.dma_semaphore, #tpu.memory_space<semaphore_mem>>) src(%98 : memref<128xf32, #tpu.memory_space<any>>) dst(%100 : memref<128xf32, #tpu.memory_space<vmem>>)
    %c0_i32_57 = arith.constant 0 : i32
    %c5_i32_58 = arith.constant 5 : i32
    %c5_i32_59 = arith.constant 5 : i32
    %c0_i32_60 = arith.constant 0 : i32
    %103 = tpu.memref_slice %arg2[%c0_i32_57, %c0_i32_60] : memref<16x128xf32, #tpu.memory_space<any>> -> memref<1x128xf32, #tpu.memory_space<any>>
    %104 = tpu.memref_squeeze %103 : memref<1x128xf32, #tpu.memory_space<any>> -> memref<128xf32, #tpu.memory_space<any>>
    %c0_i32_61 = arith.constant 0 : i32
    %105 = tpu.memref_slice %arg8[%c5_i32_58, %c0_i32_61] : memref<8x128xf32, #tpu.memory_space<vmem>> -> memref<1x128xf32, #tpu.memory_space<vmem>>
    %106 = tpu.memref_squeeze %105 : memref<1x128xf32, #tpu.memory_space<vmem>> -> memref<128xf32, #tpu.memory_space<vmem>>
    %107 = tpu.memref_slice %arg9[%c5_i32_59] : memref<8x!tpu.dma_semaphore, #tpu.memory_space<semaphore_mem>> -> memref<1x!tpu.dma_semaphore, #tpu.memory_space<semaphore_mem>>
    %108 = tpu.memref_squeeze %107 : memref<1x!tpu.dma_semaphore, #tpu.memory_space<semaphore_mem>> -> memref<!tpu.dma_semaphore, #tpu.memory_space<semaphore_mem>>
    tpu.wait_dma2 semaphore(%108 : memref<!tpu.dma_semaphore, #tpu.memory_space<semaphore_mem>>) src(%104 : memref<128xf32, #tpu.memory_space<any>>) dst(%106 : memref<128xf32, #tpu.memory_space<vmem>>)
    %c0_i32_62 = arith.constant 0 : i32
    %c6_i32_63 = arith.constant 6 : i32
    %c6_i32_64 = arith.constant 6 : i32
    %c0_i32_65 = arith.constant 0 : i32
    %109 = tpu.memref_slice %arg2[%c0_i32_62, %c0_i32_65] : memref<16x128xf32, #tpu.memory_space<any>> -> memref<1x128xf32, #tpu.memory_space<any>>
    %110 = tpu.memref_squeeze %109 : memref<1x128xf32, #tpu.memory_space<any>> -> memref<128xf32, #tpu.memory_space<any>>
    %c0_i32_66 = arith.constant 0 : i32
    %111 = tpu.memref_slice %arg8[%c6_i32_63, %c0_i32_66] : memref<8x128xf32, #tpu.memory_space<vmem>> -> memref<1x128xf32, #tpu.memory_space<vmem>>
    %112 = tpu.memref_squeeze %111 : memref<1x128xf32, #tpu.memory_space<vmem>> -> memref<128xf32, #tpu.memory_space<vmem>>
    %113 = tpu.memref_slice %arg9[%c6_i32_64] : memref<8x!tpu.dma_semaphore, #tpu.memory_space<semaphore_mem>> -> memref<1x!tpu.dma_semaphore, #tpu.memory_space<semaphore_mem>>
    %114 = tpu.memref_squeeze %113 : memref<1x!tpu.dma_semaphore, #tpu.memory_space<semaphore_mem>> -> memref<!tpu.dma_semaphore, #tpu.memory_space<semaphore_mem>>
    tpu.wait_dma2 semaphore(%114 : memref<!tpu.dma_semaphore, #tpu.memory_space<semaphore_mem>>) src(%110 : memref<128xf32, #tpu.memory_space<any>>) dst(%112 : memref<128xf32, #tpu.memory_space<vmem>>)
    %c0_i32_67 = arith.constant 0 : i32
    %c7_i32_68 = arith.constant 7 : i32
    %c7_i32_69 = arith.constant 7 : i32
    %c0_i32_70 = arith.constant 0 : i32
    %115 = tpu.memref_slice %arg2[%c0_i32_67, %c0_i32_70] : memref<16x128xf32, #tpu.memory_space<any>> -> memref<1x128xf32, #tpu.memory_space<any>>
    %116 = tpu.memref_squeeze %115 : memref<1x128xf32, #tpu.memory_space<any>> -> memref<128xf32, #tpu.memory_space<any>>
    %c0_i32_71 = arith.constant 0 : i32
    %117 = tpu.memref_slice %arg8[%c7_i32_68, %c0_i32_71] : memref<8x128xf32, #tpu.memory_space<vmem>> -> memref<1x128xf32, #tpu.memory_space<vmem>>
    %118 = tpu.memref_squeeze %117 : memref<1x128xf32, #tpu.memory_space<vmem>> -> memref<128xf32, #tpu.memory_space<vmem>>
    %119 = tpu.memref_slice %arg9[%c7_i32_69] : memref<8x!tpu.dma_semaphore, #tpu.memory_space<semaphore_mem>> -> memref<1x!tpu.dma_semaphore, #tpu.memory_space<semaphore_mem>>
    %120 = tpu.memref_squeeze %119 : memref<1x!tpu.dma_semaphore, #tpu.memory_space<semaphore_mem>> -> memref<!tpu.dma_semaphore, #tpu.memory_space<semaphore_mem>>
    tpu.wait_dma2 semaphore(%120 : memref<!tpu.dma_semaphore, #tpu.memory_space<semaphore_mem>>) src(%116 : memref<128xf32, #tpu.memory_space<any>>) dst(%118 : memref<128xf32, #tpu.memory_space<vmem>>)
    %c0 = arith.constant 0 : index
    %c0_72 = arith.constant 0 : index
    %121 = vector.load %arg8[%c0, %c0_72] : memref<8x128xf32, #tpu.memory_space<vmem>>, vector<8x128xf32>
    %c0_73 = arith.constant 0 : index
    %c0_74 = arith.constant 0 : index
    %122 = vector.load %arg3[%c0_73, %c0_74] : memref<128x128xf32, #tpu.memory_space<vmem>>, vector<128x128xf32>
    %cst = arith.constant dense<0.000000e+00> : vector<8x128xf32>
    %123 = tpu.matmul %121, %122, %cst {dimension_numbers = #tpu.dot_dimension_numbers<[1], [0], [0], [1], [0, 0, 1, 1], [], []>} : vector<8x128xf32>, vector<128x128xf32>, vector<8x128xf32> -> vector<8x128xf32>
    %c0_75 = arith.constant 0 : index
    %c0_76 = arith.constant 0 : index
    %124 = vector.load %arg4[%c0_75, %c0_76] : memref<1x128xf32, #tpu.memory_space<vmem>>, vector<1x128xf32>
    %125 = vector.broadcast %124 : vector<1x128xf32> to vector<8x128xf32>
    %126 = arith.addf %123, %125 : vector<8x128xf32>
    %127 = arith.negf %126 : vector<8x128xf32>
    %128 = math.exp %127 : vector<8x128xf32>
    %cst_77 = arith.constant 1.000000e+00 : f32
    %129 = vector.broadcast %cst_77 : f32 to vector<8x128xf32>
    %130 = arith.addf %129, %128 : vector<8x128xf32>
    %131 = arith.divf %129, %130 : vector<8x128xf32>
    %132 = arith.mulf %126, %131 : vector<8x128xf32>
    %c0_78 = arith.constant 0 : index
    %c0_79 = arith.constant 0 : index
    %133 = vector.load %arg5[%c0_78, %c0_79] : memref<128x128xf32, #tpu.memory_space<vmem>>, vector<128x128xf32>
    %cst_80 = arith.constant dense<0.000000e+00> : vector<8x128xf32>
    %134 = tpu.matmul %132, %133, %cst_80 {dimension_numbers = #tpu.dot_dimension_numbers<[1], [0], [0], [1], [0, 0, 1, 1], [], []>} : vector<8x128xf32>, vector<128x128xf32>, vector<8x128xf32> -> vector<8x128xf32>
    %c0_81 = arith.constant 0 : index
    %c0_82 = arith.constant 0 : index
    %135 = vector.load %arg6[%c0_81, %c0_82] : memref<1x128xf32, #tpu.memory_space<vmem>>, vector<1x128xf32>
    %136 = vector.broadcast %135 : vector<1x128xf32> to vector<8x128xf32>
    %137 = arith.addf %134, %136 : vector<8x128xf32>
    %c0_83 = arith.constant 0 : index
    %c0_84 = arith.constant 0 : index
    %138 = vector.load %arg7[%c0_83, %c0_84] : memref<8x128xf32, #tpu.memory_space<vmem>>, vector<8x128xf32>
    tpu.vector_store %arg7[%c0_83, %c0_84], %137 {strides = array<i32>} : memref<8x128xf32, #tpu.memory_space<vmem>>, vector<8x128xf32>,
    return
  }
  func.func @transform_1(%arg0: i32, %arg1: memref<8xi32, #tpu.memory_space<smem>>) -> (i32, i32) {
    %c0_i32 = arith.constant 0 : i32
    %c0_i32_0 = arith.constant 0 : i32
    %c0_i32_1 = arith.constant 0 : i32
    return %c0_i32, %c0_i32_0 : i32, i32
  }
  func.func @transform_2(%arg0: i32, %arg1: memref<8xi32, #tpu.memory_space<smem>>) -> (i32, i32) {
    %c0_i32 = arith.constant 0 : i32
    %c0_i32_0 = arith.constant 0 : i32
    %c0_i32_1 = arith.constant 0 : i32
    return %c0_i32, %c0_i32_0 : i32, i32
  }
  func.func @transform_3(%arg0: i32, %arg1: memref<8xi32, #tpu.memory_space<smem>>) -> (i32, i32) {
    %c0_i32 = arith.constant 0 : i32
    %c0_i32_0 = arith.constant 0 : i32
    %c0_i32_1 = arith.constant 0 : i32
    return %c0_i32, %c0_i32_0 : i32, i32
  }
  func.func @transform_4(%arg0: i32, %arg1: memref<8xi32, #tpu.memory_space<smem>>) -> (i32, i32) {
    %c0_i32 = arith.constant 0 : i32
    %c0_i32_0 = arith.constant 0 : i32
    %c0_i32_1 = arith.constant 0 : i32
    return %c0_i32, %c0_i32_0 : i32, i32
  }
  func.func @transform_5(%arg0: i32, %arg1: memref<8xi32, #tpu.memory_space<smem>>) -> (i32, i32) {
    %c0_i32 = arith.constant 0 : i32
    %c0_i32_0 = arith.constant 0 : i32
    return %arg0, %c0_i32 : i32, i32
  }
}

</mosaic_0001>

<llo_original>
// kernel: tpu_custom_call.1
$region0: #{tpu_custom_call.1}
  #allocation0 [shape = 'u32[]', space=smem, size = 0x4, offset = 0x4, fixed_abs, tag = 'smem constant byte address 0x4 - core index']
  #allocation1 [shape = 'u32[144,128]{1,0:T(1,128)}', space=vmem, size = 0x12000, scoped, tag = 'internal scratch']
  #allocation2 [shape = 'f32[8,128]{1,0:T(8,128)}', space=vmem, size = 0x1000, scoped, tag = 'scratch operand']
  #allocation3 [shape = 's32[8]{0}', space=sflag, size = 0x20, scoped, tag = 'scratch operand']
  #allocation4 [shape = 's32[1]{0}', space=sflag, size = 0x4, scoped, tag = 'scoped memory for tpu_custom_call.1']
  #allocation5 [shape = 'u8[512]{0}', space=smem, size = 0x200, scoped, tag = 'prefetched SMEM operand 0']
  #allocation12 [shape = 's32[]', space=sflag, size = 0x4, offset = 0, fixed_abs, tag = 'sflag constant byte address 0x0 - dummy sync flag']
  #allocation13 [shape = 's32[]', space=sflag, size = 0x4, offset = 0, fixed_abs, tag = 'sflag constant byte address 0x0 - dummy sync flag']
  #allocation14 [shape = 'u32[]', space=smem, size = 0x4, offset = 0x44, fixed_abs, tag = 'smem constant byte address 0x44 - assertion arg 0']
  #allocation15 [shape = 'u32[]', space=smem, size = 0x4, offset = 0x48, fixed_abs, tag = 'smem constant byte address 0x48 - assertion arg 1']
  #allocation16 [shape = 's32[]', space=sflag, size = 0x4, offset = 0, fixed_abs, tag = 'sflag constant byte address 0x0 - dummy sync flag']
  #allocation17 [shape = 's32[]', space=sflag, size = 0x4, offset = 0, fixed_abs, tag = 'sflag constant byte address 0x0 - dummy sync flag']
  #allocation18 [shape = 's32[]', space=sflag, size = 0x4, offset = 0, fixed_abs, tag = 'sflag constant byte address 0x0 - dummy sync flag']
  #allocation19 [shape = 's32[]', space=sflag, size = 0x4, offset = 0, fixed_abs, tag = 'sflag constant byte address 0x0 - dummy sync flag']
  #allocation20 [shape = 's32[]', space=sflag, size = 0x4, offset = 0, fixed_abs, tag = 'sflag constant byte address 0x0 - dummy sync flag']
  #allocation21 [shape = 's32[]', space=sflag, size = 0x4, offset = 0, fixed_abs, tag = 'sflag constant byte address 0x0 - dummy sync flag']
  #allocation22 [shape = 's32[]', space=sflag, size = 0x4, offset = 0, fixed_abs, tag = 'sflag constant byte address 0x0 - dummy sync flag']
  #allocation23 [shape = 's32[]', space=sflag, size = 0x4, offset = 0, fixed_abs, tag = 'sflag constant byte address 0x0 - dummy sync flag']
  #allocation24 [shape = 's32[]', space=sflag, size = 0x4, offset = 0, fixed_abs, tag = 'sflag constant byte address 0x0 - dummy sync flag']
  #allocation25 [shape = 's32[]', space=sflag, size = 0x4, offset = 0, fixed_abs, tag = 'sflag constant byte address 0x0 - dummy sync flag']
  #allocation26 [shape = 's32[]', space=sflag, size = 0x4, offset = 0, fixed_abs, tag = 'sflag constant byte address 0x0 - dummy sync flag']
  #allocation27 [shape = 's32[]', space=sflag, size = 0x4, offset = 0, fixed_abs, tag = 'sflag constant byte address 0x0 - dummy sync flag']
  #allocation28 [shape = 's32[]', space=sflag, size = 0x4, offset = 0, fixed_abs, tag = 'sflag constant byte address 0x0 - dummy sync flag']
  #allocation29 [shape = 's32[]', space=sflag, size = 0x4, offset = 0, fixed_abs, tag = 'sflag constant byte address 0x0 - dummy sync flag']
  %s0 = inlined_call_operand.hbm [shape: s32[8], index: 0, kind: input, shape index: {}]
  %s1 = inlined_call_operand.hbm [shape: f32[16,128], index: 1, kind: input, shape index: {}]
  %s2 = inlined_call_operand.hbm [shape: f32[128,128], index: 2, kind: input, shape index: {}]
  %s3 = inlined_call_operand.vmem [shape: f32[1,128], index: 3, kind: input, shape index: {}]
  %s4 = inlined_call_operand.hbm [shape: f32[128,128], index: 4, kind: input, shape index: {}]
  %s5 = inlined_call_operand.vmem [shape: f32[1,128], index: 5, kind: input, shape index: {}]
  %s6 = inlined_call_operand.hbm [shape: f32[8,128], index: 6, kind: output, shape index: {}]
  %s7 = sld [smem:[#allocation0]]
  $region66: #{tpu_custom_call.1} parent=0
    _
  %s9 = ssub.s32 1, %s7
  %s10 = scalar_select 0, %s9, %s7
  %12 = dma.hbm_to_smem %s0, 16, [#allocation5], [#allocation4]
  %13 = dma.done [#allocation4], 16
  %14 = sfence
  $region1: #{tpu_custom_call.1} parent=0
    #allocation6 [shape = 'u8[65536]{0}', space=vmem, size = 0x10000, scoped, tag = 'input window, operand 2, single buffered']
    #allocation7 [shape = 's32[1]{0}', space=sflag, size = 0x4, scoped, tag = 'scoped memory for tpu_custom_call.1']
    #allocation8 [shape = 's32[1]{0}', space=sflag, size = 0x4, scoped, tag = 'scoped memory for tpu_custom_call.1']
    #allocation9 [shape = 'u8[65536]{0}', space=vmem, size = 0x10000, scoped, tag = 'input window, operand 4, single buffered']
    #allocation10 [shape = 's32[1]{0}', space=sflag, size = 0x4, scoped, tag = 'scoped memory for tpu_custom_call.1']
    #allocation11 [shape = 'u8[4096]{0}', space=vmem, size = 0x1000, scoped, tag = 'output window, operand 0, single buffered']
    %15 = vsyncpa [#allocation7], 0
    %16 = vsyncpa [#allocation10], 0
    %17 = vsyncpa [#allocation8], 0
    // Predicated region
    $region2: #{tpu_custom_call.1} parent=1 // pred_check
      _
    $region3: #{tpu_custom_call.1} parent=1 // pred_check_branch
      %19 = sbr.rel (0) target = $region5
    $region4: #{tpu_custom_call.1} parent=1 // pred_region
      %s21 = ssub.s32 2048, 2048
      %22 = vsyncadd [#allocation7], %s21
      %s23 = sshll.u32 [#allocation6], 4
      %s24 = int_to_ptr.vmem [resolvable:$true] %s23
      %29 = dma.hbm_to_vmem [thread:$0]  %s2, 2048, %s24, [#allocation7], 128, 128, 8
    $region5: #{tpu_custom_call.1} parent=1 // pred_fallthru
      _
    // Predicated region
    $region6: #{tpu_custom_call.1} parent=1 // pred_check
      _
    $region7: #{tpu_custom_call.1} parent=1 // pred_check_branch
      %31 = sbr.rel (0) target = $region9
    $region8: #{tpu_custom_call.1} parent=1 // pred_region
      _
    $region9: #{tpu_custom_call.1} parent=1 // pred_fallthru
      _
    // Predicated region
    $region10: #{tpu_custom_call.1} parent=1 // pred_check
      _
    $region11: #{tpu_custom_call.1} parent=1 // pred_check_branch
      %33 = sbr.rel (0) target = $region13
    $region12: #{tpu_custom_call.1} parent=1 // pred_region
      %s35 = ssub.s32 2048, 2048
      %36 = vsyncadd [#allocation10], %s35
      %s37 = sshll.u32 [#allocation9], 4
      %s38 = int_to_ptr.vmem [resolvable:$true] %s37
      %43 = dma.hbm_to_vmem [thread:$0]  %s4, 2048, %s38, [#allocation10], 128, 128, 8
    $region13: #{tpu_custom_call.1} parent=1 // pred_fallthru
      _
    // Predicated region
    $region14: #{tpu_custom_call.1} parent=1 // pred_check
      _
    $region15: #{tpu_custom_call.1} parent=1 // pred_check_branch
      %45 = sbr.rel (0) target = $region17
    $region16: #{tpu_custom_call.1} parent=1 // pred_region
      _
    $region17: #{tpu_custom_call.1} parent=1 // pred_fallthru
      _
    // Predicated region
    $region18: #{tpu_custom_call.1} parent=1 // pred_check
      _
    $region19: #{tpu_custom_call.1} parent=1 // pred_check_branch
      %47 = sbr.rel (0) target = $region21
    $region20: #{tpu_custom_call.1} parent=1 // pred_region
      %48 = dma.done [#allocation7], 2048
    $region21: #{tpu_custom_call.1} parent=1 // pred_fallthru
      _
    // Predicated region
    $region22: #{tpu_custom_call.1} parent=1 // pred_check
      _
    $region23: #{tpu_custom_call.1} parent=1 // pred_check_branch
      %50 = sbr.rel (0) target = $region25
    $region24: #{tpu_custom_call.1} parent=1 // pred_region
      %51 = dma.done [#allocation10], 2048
    $region25: #{tpu_custom_call.1} parent=1 // pred_fallthru
      _
    %s52 = smul.u32 0, 8
    %s53 = sld [smem:[#allocation5 + %s52]]
    %s54 = smul.addr %s53, 16
    %s55 = scalar_lea.hbm %s1, %s54
    // Predicated region
    $region26: #{tpu_custom_call.1} parent=1 // pred_check
      _
    $region27: #{tpu_custom_call.1} parent=1 // pred_check_branch
      %57 = sbr.rel target = $region29
    $region28: #{tpu_custom_call.1} parent=1 // pred_region
      %58 = sst [smem:[#allocation14]] [#allocation13]
      %59 = sst [smem:[#allocation15]] [#allocation12]
    $region29: #{tpu_custom_call.1} parent=1 // pred_fallthru
      _
    %61 = shalt.err (0)
    %s63 = sshll.u32 [#allocation2], 4
    %s64 = int_to_ptr.vmem [resolvable:$true] %s63
    %66 = dma.hbm_to_vmem [thread:$0]  %s55, 16, %s64, [#allocation3]
    %s67 = sadd.s32 %s52, 1
    %s68 = sld [smem:[#allocation5 + %s67]]
    %s69 = smul.addr %s68, 16
    %s70 = scalar_lea.hbm %s1, %s69
    %s71 = scalar_lea.vmem [#allocation2], 1
    %s72 = scalar_lea.sflag [#allocation3], 1
    // Predicated region
    $region30: #{tpu_custom_call.1} parent=1 // pred_check
      _
    $region31: #{tpu_custom_call.1} parent=1 // pred_check_branch
      %74 = sbr.rel target = $region33
    $region32: #{tpu_custom_call.1} parent=1 // pred_region
      %75 = sst [smem:[#allocation14]] [#allocation17]
      %76 = sst [smem:[#allocation15]] [#allocation16]
    $region33: #{tpu_custom_call.1} parent=1 // pred_fallthru
      _
    %78 = shalt.err (0)
    %s80 = sshll.u32 %s71, 4
    %s81 = int_to_ptr.vmem [resolvable:$true] %s80
    %83 = dma.hbm_to_vmem [thread:$0]  %s70, 16, %s81, %s72
    %s84 = sadd.s32 %s52, 2
    %s85 = sld [smem:[#allocation5 + %s84]]
    %s86 = smul.addr %s85, 16
    %s87 = scalar_lea.hbm %s1, %s86
    %s88 = scalar_lea.vmem [#allocation2], 2
    %s89 = scalar_lea.sflag [#allocation3], 2
    // Predicated region
    $region34: #{tpu_custom_call.1} parent=1 // pred_check
      _
    $region35: #{tpu_custom_call.1} parent=1 // pred_check_branch
      %91 = sbr.rel target = $region37
    $region36: #{tpu_custom_call.1} parent=1 // pred_region
      %92 = sst [smem:[#allocation14]] [#allocation19]
      %93 = sst [smem:[#allocation15]] [#allocation18]
    $region37: #{tpu_custom_call.1} parent=1 // pred_fallthru
      _
    %95 = shalt.err (0)
    %s97 = sshll.u32 %s88, 4
    %s98 = int_to_ptr.vmem [resolvable:$true] %s97
    %100 = dma.hbm_to_vmem [thread:$0]  %s87, 16, %s98, %s89
    %s101 = sadd.s32 %s52, 3
    %s102 = sld [smem:[#allocation5 + %s101]]
    %s103 = smul.addr %s102, 16
    %s104 = scalar_lea.hbm %s1, %s103
    %s105 = scalar_lea.vmem [#allocation2], 3
    %s106 = scalar_lea.sflag [#allocation3], 3
    // Predicated region
    $region38: #{tpu_custom_call.1} parent=1 // pred_check
      _
    $region39: #{tpu_custom_call.1} parent=1 // pred_check_branch
      %108 = sbr.rel target = $region41
    $region40: #{tpu_custom_call.1} parent=1 // pred_region
      %109 = sst [smem:[#allocation14]] [#allocation21]
      %110 = sst [smem:[#allocation15]] [#allocation20]
    $region41: #{tpu_custom_call.1} parent=1 // pred_fallthru
      _
    %112 = shalt.err (0)
    %s114 = sshll.u32 %s105, 4
    %s115 = int_to_ptr.vmem [resolvable:$true] %s114
    %117 = dma.hbm_to_vmem [thread:$0]  %s104, 16, %s115, %s106
    %s118 = sadd.s32 %s52, 4
    %s119 = sld [smem:[#allocation5 + %s118]]
    %s120 = smul.addr %s119, 16
    %s121 = scalar_lea.hbm %s1, %s120
    %s122 = scalar_lea.vmem [#allocation2], 4
    %s123 = scalar_lea.sflag [#allocation3], 4
    // Predicated region
    $region42: #{tpu_custom_call.1} parent=1 // pred_check
      _
    $region43: #{tpu_custom_call.1} parent=1 // pred_check_branch
      %125 = sbr.rel target = $region45
    $region44: #{tpu_custom_call.1} parent=1 // pred_region
      %126 = sst [smem:[#allocation14]] [#allocation23]
      %127 = sst [smem:[#allocation15]] [#allocation22]
    $region45: #{tpu_custom_call.1} parent=1 // pred_fallthru
      _
    %129 = shalt.err (0)
    %s131 = sshll.u32 %s122, 4
    %s132 = int_to_ptr.vmem [resolvable:$true] %s131
    %134 = dma.hbm_to_vmem [thread:$0]  %s121, 16, %s132, %s123
    %s135 = sadd.s32 %s52, 5
    %s136 = sld [smem:[#allocation5 + %s135]]
    %s137 = smul.addr %s136, 16
    %s138 = scalar_lea.hbm %s1, %s137
    %s139 = scalar_lea.vmem [#allocation2], 5
    %s140 = scalar_lea.sflag [#allocation3], 5
    // Predicated region
    $region46: #{tpu_custom_call.1} parent=1 // pred_check
      _
    $region47: #{tpu_custom_call.1} parent=1 // pred_check_branch
      %142 = sbr.rel target = $region49
    $region48: #{tpu_custom_call.1} parent=1 // pred_region
      %143 = sst [smem:[#allocation14]] [#allocation25]
      %144 = sst [smem:[#allocation15]] [#allocation24]
    $region49: #{tpu_custom_call.1} parent=1 // pred_fallthru
      _
    %146 = shalt.err (0)
    %s148 = sshll.u32 %s139, 4
    %s149 = int_to_ptr.vmem [resolvable:$true] %s148
    %151 = dma.hbm_to_vmem [thread:$0]  %s138, 16, %s149, %s140
    %s152 = sadd.s32 %s52, 6
    %s153 = sld [smem:[#allocation5 + %s152]]
    %s154 = smul.addr %s153, 16
    %s155 = scalar_lea.hbm %s1, %s154
    %s156 = scalar_lea.vmem [#allocation2], 6
    %s157 = scalar_lea.sflag [#allocation3], 6
    // Predicated region
    $region50: #{tpu_custom_call.1} parent=1 // pred_check
      _
    $region51: #{tpu_custom_call.1} parent=1 // pred_check_branch
      %159 = sbr.rel target = $region53
    $region52: #{tpu_custom_call.1} parent=1 // pred_region
      %160 = sst [smem:[#allocation14]] [#allocation27]
      %161 = sst [smem:[#allocation15]] [#allocation26]
    $region53: #{tpu_custom_call.1} parent=1 // pred_fallthru
      _
    %163 = shalt.err (0)
    %s165 = sshll.u32 %s156, 4
    %s166 = int_to_ptr.vmem [resolvable:$true] %s165
    %168 = dma.hbm_to_vmem [thread:$0]  %s155, 16, %s166, %s157
    %s169 = sadd.s32 %s52, 7
    %s170 = sld [smem:[#allocation5 + %s169]]
    %s171 = smul.addr %s170, 16
    %s172 = scalar_lea.hbm %s1, %s171
    %s173 = scalar_lea.vmem [#allocation2], 7
    %s174 = scalar_lea.sflag [#allocation3], 7
    // Predicated region
    $region54: #{tpu_custom_call.1} parent=1 // pred_check
      _
    $region55: #{tpu_custom_call.1} parent=1 // pred_check_branch
      %176 = sbr.rel target = $region57
    $region56: #{tpu_custom_call.1} parent=1 // pred_region
      %177 = sst [smem:[#allocation14]] [#allocation29]
      %178 = sst [smem:[#allocation15]] [#allocation28]
    $region57: #{tpu_custom_call.1} parent=1 // pred_fallthru
      _
    %180 = shalt.err (0)
    %s182 = sshll.u32 %s173, 4
    %s183 = int_to_ptr.vmem [resolvable:$true] %s182
    %185 = dma.hbm_to_vmem [thread:$0]  %s172, 16, %s183, %s174
    %187 = dma.done [#allocation3], 16
    %189 = dma.done %s72, 16
    %191 = dma.done %s89, 16
    %193 = dma.done %s106, 16
    %195 = dma.done %s123, 16
    %197 = dma.done %s140, 16
    %199 = dma.done %s157, 16
    %201 = dma.done %s174, 16
    %v202 = vld [vmem:[#allocation2] sm:$0xff]
    %v203 = vld [vmem:[#allocation6] sm:$0xff]
    %v204 = vld [vmem:[#allocation6 + $0x8] sm:$0xff]
    %v205 = vld [vmem:[#allocation6 + $0x10] sm:$0xff]
    %v206 = vld [vmem:[#allocation6 + $0x18] sm:$0xff]
    %v207 = vld [vmem:[#allocation6 + $0x20] sm:$0xff]
    %v208 = vld [vmem:[#allocation6 + $0x28] sm:$0xff]
    %v209 = vld [vmem:[#allocation6 + $0x30] sm:$0xff]
    %v210 = vld [vmem:[#allocation6 + $0x38] sm:$0xff]
    %v211 = vld [vmem:[#allocation6 + $0x40] sm:$0xff]
    %v212 = vld [vmem:[#allocation6 + $0x48] sm:$0xff]
    %v213 = vld [vmem:[#allocation6 + $0x50] sm:$0xff]
    %v214 = vld [vmem:[#allocation6 + $0x58] sm:$0xff]
    %v215 = vld [vmem:[#allocation6 + $0x60] sm:$0xff]
    %v216 = vld [vmem:[#allocation6 + $0x68] sm:$0xff]
    %v217 = vld [vmem:[#allocation6 + $0x70] sm:$0xff]
    %v218 = vld [vmem:[#allocation6 + $0x78] sm:$0xff]
    %v219 = vld [vmem:[%s3] sm:$0x1]
    %v221 = vlaneseq
    %v222 = vshrl.u32 %v221, 7
    %v223 = vsub.s32 0, %v222
    %v224 = vrot.slane %v219, %v223
    %226 = vmatprep.subr.mxu0 0.0
    %227 = vmatpush1.msra.mxu0 %v203
    %228 = vmatprep.subr.mxu0 0.0
    %229 = vmatpush1.msra.mxu0 %v204
    %230 = vmatprep.subr.mxu0 0.0
    %231 = vmatpush1.msra.mxu0 %v205
    %232 = vmatprep.subr.mxu0 0.0
    %233 = vmatpush1.msra.mxu0 %v206
    %234 = vmatprep.subr.mxu0 0.0
    %235 = vmatpush1.msra.mxu0 %v207
    %236 = vmatprep.subr.mxu0 0.0
    %237 = vmatpush1.msra.mxu0 %v208
    %238 = vmatprep.subr.mxu0 0.0
    %239 = vmatpush1.msra.mxu0 %v209
    %240 = vmatprep.subr.mxu0 0.0
    %241 = vmatpush1.msra.mxu0 %v210
    %242 = vmatprep.subr.mxu0 0.0
    %243 = vmatpush1.msra.mxu0 %v211
    %244 = vmatprep.subr.mxu0 0.0
    %245 = vmatpush1.msra.mxu0 %v212
    %246 = vmatprep.subr.mxu0 0.0
    %247 = vmatpush1.msra.mxu0 %v213
    %248 = vmatprep.subr.mxu0 0.0
    %249 = vmatpush1.msra.mxu0 %v214
    %250 = vmatprep.subr.mxu0 0.0
    %251 = vmatpush1.msra.mxu0 %v215
    %252 = vmatprep.subr.mxu0 0.0
    %253 = vmatpush1.msra.mxu0 %v216
    %254 = vmatprep.subr.mxu0 0.0
    %255 = vmatpush1.msra.mxu0 %v217
    %256 = vmatprep.subr.mxu0 0.0
    %257 = vmatpush1.msra.mxu0 %v218
    %258 = vmatprep.subr.mxu0 0.0
    %259 = vmatpush1.msra.mxu0 0.0
    %260 = vmatprep.subr.mxu0 0.0
    %261 = vmatpush1.msra.mxu0 0.0
    %262 = vmatprep.subr.mxu0 0.0
    %263 = vmatpush1.msra.mxu0 0.0
    %264 = vmatprep.subr.mxu0 0.0
    %265 = vmatpush1.msra.mxu0 0.0
    %266 = vmatprep.subr.mxu0 0.0
    %267 = vmatpush1.msra.mxu0 0.0
    %268 = vmatprep.subr.mxu0 0.0
    %269 = vmatpush1.msra.mxu0 0.0
    %270 = vmatprep.subr.mxu0 0.0
    %271 = vmatpush1.msra.mxu0 0.0
    %272 = vmatprep.subr.mxu0 0.0
    %273 = vmatpush1.msra.mxu0 0.0
    %274 = vmatprep.subr.mxu0 0.0
    %275 = vmatpush1.msra.mxu0 0.0
    %276 = vmatprep.subr.mxu0 0.0
    %277 = vmatpush1.msra.mxu0 0.0
    %278 = vmatprep.subr.mxu0 0.0
    %279 = vmatpush1.msra.mxu0 0.0
    %280 = vmatprep.subr.mxu0 0.0
    %281 = vmatpush1.msra.mxu0 0.0
    %282 = vmatprep.subr.mxu0 0.0
    %283 = vmatpush1.msra.mxu0 0.0
    %284 = vmatprep.subr.mxu0 0.0
    %285 = vmatpush1.msra.mxu0 0.0
    %286 = vmatprep.subr.mxu0 0.0
    %287 = vmatpush1.msra.mxu0 0.0
    %288 = vmatprep.subr.mxu0 0.0
    %289 = vmatpush1.msra.mxu0 0.0
    %290 = vmatprep.mubr.f32.mxu0 0.0
    %291 = vmatmul.mubr.f32.gmra.mrb[0].mxu0 %v202
    %v292 = vpop.f32.mrb[0].mxu0
    %v293 = vadd.f32 %v224, %v292
    %v294 = vpop.f32.mrb[0].mxu0
    %295 = vdwg.mxu0
    %v296 = vxor.u32 %v293, 2147483648
    %v297 = vmul.f32 %v296, 1.442695
    %v298 = vpow.pop %v297
    %v299 = vadd.f32 %v298, 1.0
    %v300 = vrcp.pop %v299
    %v301 = vmul.f32 1.0, %v300
    %v302 = vmul.f32 %v293, %v301
    %v303 = vld [vmem:[#allocation9] sm:$0xff]
    %v304 = vld [vmem:[#allocation9 + $0x8] sm:$0xff]
    %v305 = vld [vmem:[#allocation9 + $0x10] sm:$0xff]
    %v306 = vld [vmem:[#allocation9 + $0x18] sm:$0xff]
    %v307 = vld [vmem:[#allocation9 + $0x20] sm:$0xff]
    %v308 = vld [vmem:[#allocation9 + $0x28] sm:$0xff]
    %v309 = vld [vmem:[#allocation9 + $0x30] sm:$0xff]
    %v310 = vld [vmem:[#allocation9 + $0x38] sm:$0xff]
    %v311 = vld [vmem:[#allocation9 + $0x40] sm:$0xff]
    %v312 = vld [vmem:[#allocation9 + $0x48] sm:$0xff]
    %v313 = vld [vmem:[#allocation9 + $0x50] sm:$0xff]
    %v314 = vld [vmem:[#allocation9 + $0x58] sm:$0xff]
    %v315 = vld [vmem:[#allocation9 + $0x60] sm:$0xff]
    %v316 = vld [vmem:[#allocation9 + $0x68] sm:$0xff]
    %v317 = vld [vmem:[#allocation9 + $0x70] sm:$0xff]
    %v318 = vld [vmem:[#allocation9 + $0x78] sm:$0xff]
    %v319 = vld [vmem:[%s5] sm:$0x1]
    %v321 = vlaneseq
    %v322 = vshrl.u32 %v321, 7
    %v323 = vsub.s32 0, %v322
    %v324 = vrot.slane %v319, %v323
    %326 = vmatprep.subr.mxu0 0.0
    %327 = vmatpush1.msra.mxu0 %v303
    %328 = vmatprep.subr.mxu0 0.0
    %329 = vmatpush1.msra.mxu0 %v304
    %330 = vmatprep.subr.mxu0 0.0
    %331 = vmatpush1.msra.mxu0 %v305
    %332 = vmatprep.subr.mxu0 0.0
    %333 = vmatpush1.msra.mxu0 %v306
    %334 = vmatprep.subr.mxu0 0.0
    %335 = vmatpush1.msra.mxu0 %v307
    %336 = vmatprep.subr.mxu0 0.0
    %337 = vmatpush1.msra.mxu0 %v308
    %338 = vmatprep.subr.mxu0 0.0
    %339 = vmatpush1.msra.mxu0 %v309
    %340 = vmatprep.subr.mxu0 0.0
    %341 = vmatpush1.msra.mxu0 %v310
    %342 = vmatprep.subr.mxu0 0.0
    %343 = vmatpush1.msra.mxu0 %v311
    %344 = vmatprep.subr.mxu0 0.0
    %345 = vmatpush1.msra.mxu0 %v312
    %346 = vmatprep.subr.mxu0 0.0
    %347 = vmatpush1.msra.mxu0 %v313
    %348 = vmatprep.subr.mxu0 0.0
    %349 = vmatpush1.msra.mxu0 %v314
    %350 = vmatprep.subr.mxu0 0.0
    %351 = vmatpush1.msra.mxu0 %v315
    %352 = vmatprep.subr.mxu0 0.0
    %353 = vmatpush1.msra.mxu0 %v316
    %354 = vmatprep.subr.mxu0 0.0
    %355 = vmatpush1.msra.mxu0 %v317
    %356 = vmatprep.subr.mxu0 0.0
    %357 = vmatpush1.msra.mxu0 %v318
    %358 = vmatprep.subr.mxu0 0.0
    %359 = vmatpush1.msra.mxu0 0.0
    %360 = vmatprep.subr.mxu0 0.0
    %361 = vmatpush1.msra.mxu0 0.0
    %362 = vmatprep.subr.mxu0 0.0
    %363 = vmatpush1.msra.mxu0 0.0
    %364 = vmatprep.subr.mxu0 0.0
    %365 = vmatpush1.msra.mxu0 0.0
    %366 = vmatprep.subr.mxu0 0.0
    %367 = vmatpush1.msra.mxu0 0.0
    %368 = vmatprep.subr.mxu0 0.0
    %369 = vmatpush1.msra.mxu0 0.0
    %370 = vmatprep.subr.mxu0 0.0
    %371 = vmatpush1.msra.mxu0 0.0
    %372 = vmatprep.subr.mxu0 0.0
    %373 = vmatpush1.msra.mxu0 0.0
    %374 = vmatprep.subr.mxu0 0.0
    %375 = vmatpush1.msra.mxu0 0.0
    %376 = vmatprep.subr.mxu0 0.0
    %377 = vmatpush1.msra.mxu0 0.0
    %378 = vmatprep.subr.mxu0 0.0
    %379 = vmatpush1.msra.mxu0 0.0
    %380 = vmatprep.subr.mxu0 0.0
    %381 = vmatpush1.msra.mxu0 0.0
    %382 = vmatprep.subr.mxu0 0.0
    %383 = vmatpush1.msra.mxu0 0.0
    %384 = vmatprep.subr.mxu0 0.0
    %385 = vmatpush1.msra.mxu0 0.0
    %386 = vmatprep.subr.mxu0 0.0
    %387 = vmatpush1.msra.mxu0 0.0
    %388 = vmatprep.subr.mxu0 0.0
    %389 = vmatpush1.msra.mxu0 0.0
    %390 = vmatprep.mubr.f32.mxu0 0.0
    %391 = vmatmul.mubr.f32.gmra.mrb[0].mxu0 %v302
    %v392 = vpop.f32.mrb[0].mxu0
    %v393 = vadd.f32 %v324, %v392
    %v394 = vpop.f32.mrb[0].mxu0
    %395 = vdwg.mxu0
    %396 = vst [vmem:[#allocation11] sm:$0xff] %v393
    // Predicated region
    $region58: #{tpu_custom_call.1} parent=1 // pred_check
      _
    $region59: #{tpu_custom_call.1} parent=1 // pred_check_branch
      %398 = sbr.rel (0) target = $region61
    $region60: #{tpu_custom_call.1} parent=1 // pred_region
      %s400 = ssub.s32 128, 128
      %401 = vsyncadd [#allocation8], %s400
      %s403 = sshll.u32 [#allocation11], 4
      %s404 = int_to_ptr.vmem [resolvable:$true] %s403
      %406 = dma.vmem_to_hbm [thread:$0]  %s404, 128, %s6, [#allocation8]
    $region61: #{tpu_custom_call.1} parent=1 // pred_fallthru
      _
    // Predicated region
    $region62: #{tpu_custom_call.1} parent=1 // pred_check
      _
    $region63: #{tpu_custom_call.1} parent=1 // pred_check_branch
      %408 = sbr.rel (0) target = $region65
    $region64: #{tpu_custom_call.1} parent=1 // pred_region
      %409 = dma.done [#allocation8], 128
    $region65: #{tpu_custom_call.1} parent=1 // pred_fallthru
      _
    %410 = vsyncpa [#allocation7], 1
    %411 = vsyncpa [#allocation10], 1
    %412 = vsyncpa [#allocation8], 1
  %413 = vsyncmov [#allocation3]
  %s414 = vpop.sfrf %413
  %p415 = scmp.eq.s32.totalorder %s414, 0
  %p416 = pneg %p415
  %418 = shalt.err (%p416)
  %s419 = scalar_lea.sflag [#allocation3], 1
  %420 = vsyncmov %s419
  %s421 = vpop.sfrf %420
  %p422 = scmp.eq.s32.totalorder %s421, 0
  %p423 = pneg %p422
  %425 = shalt.err (%p423)
  %s426 = scalar_lea.sflag [#allocation3], 2
  %427 = vsyncmov %s426
  %s428 = vpop.sfrf %427
  %p429 = scmp.eq.s32.totalorder %s428, 0
  %p430 = pneg %p429
  %432 = shalt.err (%p430)
  %s433 = scalar_lea.sflag [#allocation3], 3
  %434 = vsyncmov %s433
  %s435 = vpop.sfrf %434
  %p436 = scmp.eq.s32.totalorder %s435, 0
  %p437 = pneg %p436
  %439 = shalt.err (%p437)
  %s440 = scalar_lea.sflag [#allocation3], 4
  %441 = vsyncmov %s440
  %s442 = vpop.sfrf %441
  %p443 = scmp.eq.s32.totalorder %s442, 0
  %p444 = pneg %p443
  %446 = shalt.err (%p444)
  %s447 = scalar_lea.sflag [#allocation3], 5
  %448 = vsyncmov %s447
  %s449 = vpop.sfrf %448
  %p450 = scmp.eq.s32.totalorder %s449, 0
  %p451 = pneg %p450
  %453 = shalt.err (%p451)
  %s454 = scalar_lea.sflag [#allocation3], 6
  %455 = vsyncmov %s454
  %s456 = vpop.sfrf %455
  %p457 = scmp.eq.s32.totalorder %s456, 0
  %p458 = pneg %p457
  %460 = shalt.err (%p458)
  %s461 = scalar_lea.sflag [#allocation3], 7
  %462 = vsyncmov %s461
  %s463 = vpop.sfrf %462
  %p464 = scmp.eq.s32.totalorder %s463, 0
  %p465 = pneg %p464
  %467 = shalt.err (%p465)

</llo_original>
